<compile_context>
chip_gen: v5e
topology: v5e:2x2
jax: 0.10.0
libtpu: 0.0.40
codegen_flags: <defaults>
</compile_context>

<pallas_src>
import math

import jax
import jax.numpy as jnp
from jax.experimental import pallas as pl
from jax.experimental.pallas import tpu as pltpu


# ---------------------------------------------------------------------------
# Copy kernel: pure data movement HBM -> VMEM -> HBM, one lane-dense tile per
# grid step. Only used when the caller explicitly asks to materialize.
# ---------------------------------------------------------------------------
def _copy_kernel(x_ref, o_ref):
    o_ref[...] = x_ref[...]


_LANE_CANDIDATES = (4096, 2048, 1024, 512, 256, 128)

# Conservative defaults (fit v7x: 64 MiB physical VMEM, 32 MiB scoped default).
# 2 arrays x 2 pipeline buffers x 6 MiB = 24 MiB < 32 MiB.
_DEFAULT_BLOCK_BYTES = 6 * 1024 * 1024
_DEFAULT_VMEM_LIMIT = 32 * 1024 * 1024

# Larger budget for 128 MiB-VMEM parts (v5e / v6e): 2 x 2 x 12 MiB = 48 MiB.
_BIG_BLOCK_BYTES = 12 * 1024 * 1024
_BIG_VMEM_LIMIT = 64 * 1024 * 1024

# Below this size a single fused XLA copy beats the pallas_call launch cost.
_MIN_PALLAS_BYTES = 64 * 1024


def _tpu_budgets():
    """Per-generation (block_bytes, vmem_limit_bytes), conservative fallback."""
    block_bytes, vmem_limit = _DEFAULT_BLOCK_BYTES, _DEFAULT_VMEM_LIMIT
    try:
        info = pltpu.get_tpu_info()
        cap = getattr(info, "vmem_capacity_bytes", None)
        if isinstance(cap, int) and cap >= 96 * 1024 * 1024:
            # v5e / v6e: 128 MiB physical VMEM -> larger blocks amortize the
            # ~0.35us-per-step overhead further. Never applied on v7x (64 MiB).
            block_bytes, vmem_limit = _BIG_BLOCK_BYTES, _BIG_VMEM_LIMIT
    except Exception:
        pass  # keep the conservative (v7x-safe) defaults
    return block_bytes, vmem_limit


def _choose_layout(total, itemsize, block_bytes):
    """Pick a contiguous (rows, lanes) view + sublane-aligned row tile.

    `total` must be a multiple of 128 (callers pad first).
    """
    lanes = None
    for cand in _LANE_CANDIDATES:
        if total % cand == 0 and total // cand >= 8:
            lanes = cand
            break
    if lanes is None:
        for cand in _LANE_CANDIDATES:
            if total % cand == 0:
                lanes = cand
                break
    if lanes is None:
        return None

    rows = total // lanes
    # Sublane alignment per dtype packing: f32 -> 8, bf16 -> 16, int8 -> 32.
    sub = 8 * max(1, 4 // itemsize)
    if rows <= sub:
        return rows, lanes, rows  # single full-extent block (always legal)

    # Budget-limited, sublane-aligned tile.
    tile_rows = max(sub, (block_bytes // (lanes * itemsize)) // sub * sub)
    # Guarantee >=2 grid steps when possible so v7x's two TensorCores both get
    # work (one extra step is negligible overhead; neutral on 1-TC chips).
    half = ((rows + 1) // 2) // sub * sub
    if half >= sub:
        tile_rows = min(tile_rows, half)
    tile_rows = min(tile_rows, rows // sub * sub)
    tile_rows = max(tile_rows, sub)

    # Prefer a tile that divides rows evenly (no masked partial-store tail),
    # but never shrink below half the budget tile (keeps the grid small).
    if rows % tile_rows != 0:
        lo = max(sub, (tile_rows // 2 // sub) * sub)
        for cand in range(tile_rows, lo - 1, -sub):
            if cand >= sub and rows % cand == 0:
                tile_rows = cand
                break
    return rows, lanes, tile_rows


def _pallas_copy_flat(x):
    """Copy `x` through a Pallas kernel; returns the data flattened to 1-D."""
    total = math.prod(x.shape)
    if total == 0:
        return jnp.reshape(x, (total,))
    itemsize = jnp.dtype(x.dtype).itemsize
    nbytes = total * itemsize

    if nbytes < _MIN_PALLAS_BYTES:
        # Launch + pipeline prologue/epilogue would dominate; let XLA do it.
        return jnp.reshape(x, (total,))

    block_bytes, vmem_limit = _tpu_budgets()

    flat = jnp.reshape(x, (total,))
    pad = (-total) % 128
    padded_total = total + pad
    if pad:
        # Pad-and-slice path: keeps the Pallas copy lane-dense and ensures
        # materialize=True always produces a fresh contiguous buffer.
        flat = jnp.pad(flat, (0, pad))

    rows, lanes, tile_rows = _choose_layout(padded_total, itemsize, block_bytes)
    x2d = jnp.reshape(flat, (rows, lanes))  # contiguous row-major view
    grid = (pl.cdiv(rows, tile_rows),)

    out = pl.pallas_call(
        _copy_kernel,
        out_shape=jax.ShapeDtypeStruct((rows, lanes), x.dtype),
        grid_spec=pltpu.PrefetchScalarGridSpec(
            num_scalar_prefetch=0,
            grid=grid,
            in_specs=[pl.BlockSpec((tile_rows, lanes), lambda i: (i, 0))],
            out_specs=pl.BlockSpec((tile_rows, lanes), lambda i: (i, 0)),
        ),
        compiler_params=pltpu.CompilerParams(
            dimension_semantics=("parallel",),
            vmem_limit_bytes=vmem_limit,
        ),
        cost_estimate=pl.CostEstimate(
            flops=0,
            transcendentals=0,
            bytes_accessed=2 * padded_total * itemsize,
        ),
    )(x2d)

    out_flat = jnp.reshape(out, (padded_total,))
    if pad:
        out_flat = out_flat[:total]
    return out_flat


class Reshape:
    """JAX/Pallas equivalent of the PyTorch Reshape(nn.Module).

    forward(x) == x.view(x.size(0), *dims).

    Default path is metadata-only (zero HBM traffic). Pass materialize=True to
    route the data through the Pallas streaming-copy kernel (fresh contiguous
    buffer at HBM-roofline cost).
    """

    def __init__(self, *dims, materialize=False):
        self.dims = dims
        self.materialize = materialize

    def _resolve_dims(self, n):
        dims = list(self.dims)
        if dims.count(-1) > 1:
            raise ValueError("only one dimension may be -1")
        if -1 in dims:
            rest = math.prod(d for d in dims if d != -1)
            if rest <= 0 or n % rest != 0:
                raise ValueError(
                    f"cannot infer -1: {n} elements not divisible by {rest}")
            dims[dims.index(-1)] = n // rest
        else:
            if math.prod(dims) != n:
                raise ValueError(
                    f"shape mismatch for view: {n} elements vs {tuple(self.dims)}")
        return tuple(dims)

    def __call__(self, x: jax.Array) -> jax.Array:
        b = x.shape[0]
        n = math.prod(x.shape[1:])
        dims = self._resolve_dims(n)
        if not self.materialize:
            # Reshape is pure metadata: zero-cost, no kernel, no HBM traffic.
            return jnp.reshape(x, (b, *dims))
        flat = _pallas_copy_flat(x)            # single HBM-roofline copy
        return jnp.reshape(flat, (b, *dims))   # final view shape (metadata)


if __name__ == "__main__":
    key = jax.random.PRNGKey(0)
    k0, k1, k2 = jax.random.split(key, 3)

    # 1) Default (optimal) path on the canonical small activation shape:
    #    (B=2, C=4, H=16, W=16) -> (2, 16, 64). Metadata-only, no Pallas copy.
    x = jax.random.normal(k0, (2, 4, 16, 16), dtype=jnp.float32)
    expected = jnp.reshape(x, (2, 16, 64))
    y_meta = Reshape(16, 64)(x)
    jax.block_until_ready(y_meta)
    assert y_meta.shape == (2, 16, 64), y_meta.shape
    assert y_meta.dtype == x.dtype
    assert bool(jnp.array_equal(y_meta, expected))

    # 2) Materialized path on a slightly larger (still small) activation so the
    #    Pallas streaming copy actually runs: (2, 4, 64, 128) -> (2, 64, 512).
    x2 = jax.random.normal(k1, (2, 4, 64, 128), dtype=jnp.float32)   # 256 KiB
    e2 = jnp.reshape(x2, (2, 64, 512))
    y2 = Reshape(64, 512, materialize=True)(x2)
    jax.block_until_ready(y2)
    assert y2.shape == (2, 64, 512), y2.shape
    assert y2.dtype == x2.dtype
    assert bool(jnp.array_equal(y2, e2))

    # 3) -1 inference parity with torch.view (validated divisibility).
    y3 = Reshape(-1, 512, materialize=True)(x2)
    jax.block_until_ready(y3)
    assert y3.shape == (2, 64, 512), y3.shape
    assert bool(jnp.array_equal(y3, e2))

    # 4) Element count NOT divisible by 128 -> pad-and-slice Pallas path, with
    #    a ragged last grid block (exercises edge-block masking).
    x4 = jax.random.normal(k2, (2, 5, 63, 129), dtype=jnp.float32)
    e4 = jnp.reshape(x4, (2, 5, 63 * 129))
    y4 = Reshape(5, -1, materialize=True)(x4)
    jax.block_until_ready(y4)
    assert y4.shape == (2, 5, 63 * 129), y4.shape
    assert bool(jnp.array_equal(y4, e4))

    print("KERNEL_OK")
</pallas_src>

<mosaic_0001>
module attributes {stable_mosaic.version = 11 : i64} {
  func.func @_copy_kernel(%arg0: i32, %arg1: memref<8x4096xf32, #tpu.memory_space<vmem>>, %arg2: memref<8x4096xf32, #tpu.memory_space<vmem>>) attributes {dimension_semantics = [#tpu.dimension_semantics<parallel>], iteration_bounds = array<i64: 2>, scalar_prefetch = 0 : i64, scratch_operands = 0 : i64, tpu.core_type = #tpu.core_type<tc>, window_params = [{transform_indices = @transform_0, window_bounds = array<i64: 8, 4096>}, {transform_indices = @transform_1, window_bounds = array<i64: 8, 4096>}]} {
    %c0 = arith.constant 0 : index
    %c0_0 = arith.constant 0 : index
    %0 = vector.load %arg1[%c0, %c0_0] : memref<8x4096xf32, #tpu.memory_space<vmem>>, vector<8x4096xf32>
    %c0_1 = arith.constant 0 : index
    %c0_2 = arith.constant 0 : index
    %1 = vector.load %arg2[%c0_1, %c0_2] : memref<8x4096xf32, #tpu.memory_space<vmem>>, vector<8x4096xf32>
    tpu.vector_store %arg2[%c0_1, %c0_2], %0 {strides = array<i32>} : memref<8x4096xf32, #tpu.memory_space<vmem>>, vector<8x4096xf32>,
    return
  }
  func.func @transform_0(%arg0: i32) -> (i32, i32) {
    %c0_i32 = arith.constant 0 : i32
    %c0_i32_0 = arith.constant 0 : i32
    return %arg0, %c0_i32 : i32, i32
  }
  func.func @transform_1(%arg0: i32) -> (i32, i32) {
    %c0_i32 = arith.constant 0 : i32
    %c0_i32_0 = arith.constant 0 : i32
    return %arg0, %c0_i32 : i32, i32
  }
}

</mosaic_0001>

<llo_original>
// kernel: tpu_custom_call.1
$region0: #{tpu_custom_call.1}
  #allocation0 [shape = 'u32[]', space=smem, size = 0x4, offset = 0x4, fixed_abs, tag = 'smem constant byte address 0x4 - core index']
  #allocation1 [shape = 'u32[72,128]{1,0:T(1,128)}', space=vmem, size = 0x9000, scoped, tag = 'internal scratch']
  %s0 = inlined_call_operand.hbm [shape: f32[16,4096], index: 0, kind: input, shape index: {}]
  %s1 = inlined_call_operand.hbm [shape: f32[16,4096], index: 1, kind: output, shape index: {}]
  %s2 = sld [smem:[#allocation0]]
  $region41: #{tpu_custom_call.1} parent=0
    _
  %s4 = ssub.s32 1, %s2
  %s5 = scalar_select 0, %s4, %s2
  $region1: #{tpu_custom_call.1} parent=0
    #allocation2 [shape = 'u8[262144]{0}', space=vmem, size = 0x40000, scoped, tag = 'input window, operand 0']
    #allocation3 [shape = 's32[2]{0}', space=sflag, size = 0x8, scoped, tag = 'scoped memory for tpu_custom_call.1']
    #allocation4 [shape = 's32[2]{0}', space=sflag, size = 0x8, scoped, tag = 'scoped memory for tpu_custom_call.1']
    #allocation5 [shape = 'u8[262144]{0}', space=vmem, size = 0x40000, scoped, tag = 'output window, operand 0']
    %6 = vsyncpa [#allocation3], 0
    %s7 = scalar_lea.sflag [#allocation3], 1
    %8 = vsyncpa %s7, 0
    %9 = vsyncpa [#allocation4], 0
    %s10 = scalar_lea.sflag [#allocation4], 1
    %11 = vsyncpa %s10, 0
    loop: start=0, step=1, limit=4
    $region2: #{tpu_custom_call.1} parent=1 // loop_pre_header
      _
    $region3: #{tpu_custom_call.1} parent=1 // loop_header
      %s13 = sphi 0, %s17
      %p14 = scmp.ge.s32.totalorder %s13, 4
      %s23 = sphi 0, %s25
      %s26 = sphi 0, %s23
      %s27 = sphi 0, %s26
      %s43 = sphi 0, %s27
      %s49 = sphi 0, %s51
      %s52 = sphi 0, %s49
      %s53 = sphi 0, %s52
      %s69 = sphi 0, %s53
    $region4: #{tpu_custom_call.1} parent=1 // loop_header_branch
      %16 = sbr.rel (%p14) target = $region8
    $region5: #{tpu_custom_call.1} parent=1 // loop_body
      %s18 = ssub.s32 %s13, 1
      %s19 = ssub.s32 %s13, 2
      %s20 = sadd.s32 %s13, 1
      %s21 = ssub.s32 %s13, %s20
      %p22 = scmp.eq.s32.totalorder %s21, 0
      %s24 = sadd.s32 %s23, 1
      %s25 = scalar_select %p22, %s23, %s24
      %p28 = pneg %p22
      %p29 = scmp.eq.s32.totalorder %s13, 1
      %p30 = por %p28, %p29
      %p31 = scmp.ne.s32.totalorder %s23, %s26
      %p32 = scmp.eq.s32.totalorder %s13, 0
      %p33 = por %p31, %p32
      %p34 = scmp.ne.s32.totalorder %s23, %s26
      %p35 = scmp.eq.s32.totalorder %s18, 1
      %p36 = por %p34, %p35
      %p37 = scmp.ne.s32.totalorder %s26, %s27
      %p38 = scmp.eq.s32.totalorder %s18, 0
      %p39 = por %p37, %p38
      %p40 = scmp.ne.s32.totalorder %s26, %s27
      %p41 = scmp.eq.s32.totalorder %s19, 1
      %p42 = por %p40, %p41
      %p44 = scmp.ne.s32.totalorder %s27, %s43
      %p45 = scmp.eq.s32.totalorder %s19, 0
      %p46 = por %p44, %p45
      %s47 = ssub.s32 %s13, %s20
      %p48 = scmp.eq.s32.totalorder %s47, 0
      %s50 = sadd.s32 %s49, 1
      %s51 = scalar_select %p48, %s49, %s50
      %p54 = pneg %p48
      %p55 = scmp.eq.s32.totalorder %s13, 1
      %p56 = por %p54, %p55
      %p57 = scmp.ne.s32.totalorder %s49, %s52
      %p58 = scmp.eq.s32.totalorder %s13, 0
      %p59 = por %p57, %p58
      %p60 = scmp.ne.s32.totalorder %s49, %s52
      %p61 = scmp.eq.s32.totalorder %s18, 1
      %p62 = por %p60, %p61
      %p63 = scmp.ne.s32.totalorder %s52, %s53
      %p64 = scmp.eq.s32.totalorder %s18, 0
      %p65 = por %p63, %p64
      %p66 = scmp.ne.s32.totalorder %s52, %s53
      %p67 = scmp.eq.s32.totalorder %s19, 1
      %p68 = por %p66, %p67
      %p70 = scmp.ne.s32.totalorder %s53, %s69
      %p71 = scmp.eq.s32.totalorder %s19, 0
      %p72 = por %p70, %p71
      %p73 = scmp.le.s32.totalorder 1, %s13
      %p74 = scmp.lt.s32.totalorder %s13, 3
      %p75 = pnand %p73, %p74
      %p76 = pneg %p75
      // Predicated region
      $region9: #{tpu_custom_call.1} parent=5 // pred_check
        _
      $region10: #{tpu_custom_call.1} parent=5 // pred_check_branch
        %78 = sbr.rel (%p75) target = $region12
      $region11: #{tpu_custom_call.1} parent=5 // pred_region
        %s79 = ssub.s32 %s13, 1
      $region12: #{tpu_custom_call.1} parent=5 // pred_fallthru
        _
      %p80 = scmp.lt.s32.totalorder %s13, 2
      // Predicated region
      $region13: #{tpu_custom_call.1} parent=5 // pred_check
        %p81 = pneg %p80
      $region14: #{tpu_custom_call.1} parent=5 // pred_check_branch
        %83 = sbr.rel (%p81) target = $region16
      $region15: #{tpu_custom_call.1} parent=5 // pred_region
        // Predicated region
        $region17: #{tpu_custom_call.1} parent=15 // pred_check
          %p84 = pneg %p33
        $region18: #{tpu_custom_call.1} parent=15 // pred_check_branch
          %86 = sbr.rel (%p84) target = $region20
        $region19: #{tpu_custom_call.1} parent=15 // pred_region
          %s87 = sand.u32 %s23, 1
          %s88 = scalar_lea.sflag [#allocation3], %s87
          %s89 = sand.u32 %s23, 1
          %s90 = smul.addr %s89, 256
          %s91 = scalar_lea.vmem [#allocation2], %s90
          %93 = vsyncadd %s88, 0
          %s94 = smul.addr %s13, 32
          %s95 = smul.addr %s94, 8
          %s96 = scalar_lea.hbm %s0, %s95
          %s98 = sshll.u32 %s96, 4
          %s99 = int_to_ptr.hbm [resolvable:$true] %s98
          %s100 = sshll.u32 %s91, 4
          %s101 = int_to_ptr.vmem [resolvable:$true] %s100
          %103 = dma.hbm_to_vmem [thread:$0]  %s99, 4096, %s101, %s88
        $region20: #{tpu_custom_call.1} parent=15 // pred_fallthru
          _
      $region16: #{tpu_custom_call.1} parent=5 // pred_fallthru
        _
      %p104 = scmp.le.s32.totalorder 1, %s13
      %p105 = scmp.lt.s32.totalorder %s13, 3
      %p106 = pnand %p104, %p105
      %p107 = pneg %p106
      // Predicated region
      $region21: #{tpu_custom_call.1} parent=5 // pred_check
        _
      $region22: #{tpu_custom_call.1} parent=5 // pred_check_branch
        %109 = sbr.rel (%p106) target = $region24
      $region23: #{tpu_custom_call.1} parent=5 // pred_region
        %s110 = ssub.s32 %s13, 1
        %s111 = sand.u32 %s26, 1
        %s112 = scalar_lea.sflag [#allocation3], %s111
        %s113 = sand.u32 %s26, 1
        %s114 = smul.addr %s113, 256
        %s115 = scalar_lea.vmem [#allocation2], %s114
        // Predicated region
        $region25: #{tpu_custom_call.1} parent=23 // pred_check
          %p116 = pneg %p39
        $region26: #{tpu_custom_call.1} parent=23 // pred_check_branch
          %118 = sbr.rel (%p116) target = $region28
        $region27: #{tpu_custom_call.1} parent=23 // pred_region
          %120 = dma.done %s112, 4096
        $region28: #{tpu_custom_call.1} parent=23 // pred_fallthru
          _
        %s121 = sand.u32 %s26, 1
        %s122 = scalar_lea.sflag [#allocation3], %s121
        %s123 = sand.u32 %s26, 1
        %s124 = smul.addr %s123, 256
        %s125 = scalar_lea.vmem [#allocation2], %s124
        %p126 = pneg %p39
        %p127 = pneg %p36
        %p128 = pneg %p65
        %p129 = pneg %p62
        %s130 = sand.u32 %s52, 1
        %s131 = scalar_lea.sflag [#allocation4], %s130
        %s132 = sand.u32 %s52, 1
        %s133 = smul.addr %s132, 256
        %s134 = scalar_lea.vmem [#allocation5], %s133
        %v135 = vld [vmem:[%s115] sm:$0xff]
        %v136 = vld [vmem:[%s115 + $0x8] sm:$0xff]
        %v137 = vld [vmem:[%s115 + $0x10] sm:$0xff]
        %v138 = vld [vmem:[%s115 + $0x18] sm:$0xff]
        %v139 = vld [vmem:[%s115 + $0x20] sm:$0xff]
        %v140 = vld [vmem:[%s115 + $0x28] sm:$0xff]
        %v141 = vld [vmem:[%s115 + $0x30] sm:$0xff]
        %v142 = vld [vmem:[%s115 + $0x38] sm:$0xff]
        %v143 = vld [vmem:[%s115 + $0x40] sm:$0xff]
        %v144 = vld [vmem:[%s115 + $0x48] sm:$0xff]
        %v145 = vld [vmem:[%s115 + $0x50] sm:$0xff]
        %v146 = vld [vmem:[%s115 + $0x58] sm:$0xff]
        %v147 = vld [vmem:[%s115 + $0x60] sm:$0xff]
        %v148 = vld [vmem:[%s115 + $0x68] sm:$0xff]
        %v149 = vld [vmem:[%s115 + $0x70] sm:$0xff]
        %v150 = vld [vmem:[%s115 + $0x78] sm:$0xff]
        %v151 = vld [vmem:[%s115 + $0x80] sm:$0xff]
        %v152 = vld [vmem:[%s115 + $0x88] sm:$0xff]
        %v153 = vld [vmem:[%s115 + $0x90] sm:$0xff]
        %v154 = vld [vmem:[%s115 + $0x98] sm:$0xff]
        %v155 = vld [vmem:[%s115 + $0xa0] sm:$0xff]
        %v156 = vld [vmem:[%s115 + $0xa8] sm:$0xff]
        %v157 = vld [vmem:[%s115 + $0xb0] sm:$0xff]
        %v158 = vld [vmem:[%s115 + $0xb8] sm:$0xff]
        %v159 = vld [vmem:[%s115 + $0xc0] sm:$0xff]
        %v160 = vld [vmem:[%s115 + $0xc8] sm:$0xff]
        %v161 = vld [vmem:[%s115 + $0xd0] sm:$0xff]
        %v162 = vld [vmem:[%s115 + $0xd8] sm:$0xff]
        %v163 = vld [vmem:[%s115 + $0xe0] sm:$0xff]
        %v164 = vld [vmem:[%s115 + $0xe8] sm:$0xff]
        %v165 = vld [vmem:[%s115 + $0xf0] sm:$0xff]
        %v166 = vld [vmem:[%s115 + $0xf8] sm:$0xff]
        %167 = vst [vmem:[%s134] sm:$0xff] %v135
        %168 = vst [vmem:[%s134 + $0x8] sm:$0xff] %v136
        %169 = vst [vmem:[%s134 + $0x10] sm:$0xff] %v137
        %170 = vst [vmem:[%s134 + $0x18] sm:$0xff] %v138
        %171 = vst [vmem:[%s134 + $0x20] sm:$0xff] %v139
        %172 = vst [vmem:[%s134 + $0x28] sm:$0xff] %v140
        %173 = vst [vmem:[%s134 + $0x30] sm:$0xff] %v141
        %174 = vst [vmem:[%s134 + $0x38] sm:$0xff] %v142
        %175 = vst [vmem:[%s134 + $0x40] sm:$0xff] %v143
        %176 = vst [vmem:[%s134 + $0x48] sm:$0xff] %v144
        %177 = vst [vmem:[%s134 + $0x50] sm:$0xff] %v145
        %178 = vst [vmem:[%s134 + $0x58] sm:$0xff] %v146
        %179 = vst [vmem:[%s134 + $0x60] sm:$0xff] %v147
        %180 = vst [vmem:[%s134 + $0x68] sm:$0xff] %v148
        %181 = vst [vmem:[%s134 + $0x70] sm:$0xff] %v149
        %182 = vst [vmem:[%s134 + $0x78] sm:$0xff] %v150
        %183 = vst [vmem:[%s134 + $0x80] sm:$0xff] %v151
        %184 = vst [vmem:[%s134 + $0x88] sm:$0xff] %v152
        %185 = vst [vmem:[%s134 + $0x90] sm:$0xff] %v153
        %186 = vst [vmem:[%s134 + $0x98] sm:$0xff] %v154
        %187 = vst [vmem:[%s134 + $0xa0] sm:$0xff] %v155
        %188 = vst [vmem:[%s134 + $0xa8] sm:$0xff] %v156
        %189 = vst [vmem:[%s134 + $0xb0] sm:$0xff] %v157
        %190 = vst [vmem:[%s134 + $0xb8] sm:$0xff] %v158
        %191 = vst [vmem:[%s134 + $0xc0] sm:$0xff] %v159
        %192 = vst [vmem:[%s134 + $0xc8] sm:$0xff] %v160
        %193 = vst [vmem:[%s134 + $0xd0] sm:$0xff] %v161
        %194 = vst [vmem:[%s134 + $0xd8] sm:$0xff] %v162
        %195 = vst [vmem:[%s134 + $0xe0] sm:$0xff] %v163
        %196 = vst [vmem:[%s134 + $0xe8] sm:$0xff] %v164
        %197 = vst [vmem:[%s134 + $0xf0] sm:$0xff] %v165
        %198 = vst [vmem:[%s134 + $0xf8] sm:$0xff] %v166
        %s199 = sand.u32 %s52, 1
        %s200 = scalar_lea.sflag [#allocation4], %s199
        %s201 = sand.u32 %s52, 1
        %s202 = smul.addr %s201, 256
        %s203 = scalar_lea.vmem [#allocation5], %s202
        // Predicated region
        $region29: #{tpu_custom_call.1} parent=23 // pred_check
          %p204 = pneg %p62
        $region30: #{tpu_custom_call.1} parent=23 // pred_check_branch
          %206 = sbr.rel (%p204) target = $region32
        $region31: #{tpu_custom_call.1} parent=23 // pred_region
          %208 = vsyncadd %s200, 0
          %s209 = smul.addr %s18, 32
          %s210 = smul.addr %s209, 8
          %s211 = scalar_lea.hbm %s1, %s210
          %s213 = sshll.u32 %s203, 4
          %s214 = int_to_ptr.vmem [resolvable:$true] %s213
          %s215 = sshll.u32 %s211, 4
          %s216 = int_to_ptr.hbm [resolvable:$true] %s215
          %218 = dma.vmem_to_hbm [thread:$0]  %s214, 4096, %s216, %s200
        $region32: #{tpu_custom_call.1} parent=23 // pred_fallthru
          _
      $region24: #{tpu_custom_call.1} parent=5 // pred_fallthru
        _
      %p219 = scmp.le.s32.totalorder 2, %s13
      // Predicated region
      $region33: #{tpu_custom_call.1} parent=5 // pred_check
        %p220 = pneg %p219
      $region34: #{tpu_custom_call.1} parent=5 // pred_check_branch
        %222 = sbr.rel (%p220) target = $region36
      $region35: #{tpu_custom_call.1} parent=5 // pred_region
        %s223 = ssub.s32 %s13, 2
        // Predicated region
        $region37: #{tpu_custom_call.1} parent=35 // pred_check
          %p224 = pneg %p68
        $region38: #{tpu_custom_call.1} parent=35 // pred_check_branch
          %226 = sbr.rel (%p224) target = $region40
        $region39: #{tpu_custom_call.1} parent=35 // pred_region
          %s227 = sand.u32 %s53, 1
          %s228 = scalar_lea.sflag [#allocation4], %s227
          %s229 = sand.u32 %s53, 1
          %s230 = smul.addr %s229, 256
          %s231 = scalar_lea.vmem [#allocation5], %s230
          %233 = dma.done %s228, 4096
        $region40: #{tpu_custom_call.1} parent=35 // pred_fallthru
          _
      $region36: #{tpu_custom_call.1} parent=5 // pred_fallthru
        _
    $region6: #{tpu_custom_call.1} parent=1 // loop_footer
      %s17 = sadd.s32 1, %s13
    $region7: #{tpu_custom_call.1} parent=1 // loop_footer_branch
      %12 = sbr.rel target = $region3
    $region8: #{tpu_custom_call.1} parent=1 // loop_exit
      _
    %234 = vsyncpa [#allocation3], 1
    %s235 = scalar_lea.sflag [#allocation3], 1
    %236 = vsyncpa %s235, 1
    %237 = vsyncpa [#allocation4], 1
    %s238 = scalar_lea.sflag [#allocation4], 1
    %239 = vsyncpa %s238, 1

</llo_original>
